<compile_context>
chip_gen: v7x
topology: tpu7x:2x2x1
jax: 0.10.0
libtpu: 0.0.40
codegen_flags: <defaults>
</compile_context>

<pallas_src>
import functools

import jax
import jax.numpy as jnp
from jax.experimental import pallas as pl
from jax.experimental.pallas import tpu as pltpu

_LANE = 128   # lane width: last dims of blocks should be 128-multiples


def _round_up(x, m):
    return ((x + m - 1) // m) * m


def _mlp_tanh_kernel(x_ref, w1_ref, b1_ref, w2_ref, b2_ref, w3_ref, b3_ref,
                     o_ref):
    # x: (TB, F) f32 -> cast to compute dtype in vregs (no wrapper pad/cast).
    # All matmuls accumulate in f32 on the MXU; biases stay f32.
    x = x_ref[...].astype(w1_ref.dtype)
    a1 = (jnp.dot(x, w1_ref[...], preferred_element_type=jnp.float32)
          + b1_ref[...])
    # Hidden tanh in the compute dtype: bf16 tanh halves EUP time on v6e/v7x;
    # on the f32 path (or v5e) the cast is a no-op / neutral.
    h1 = jnp.tanh(a1.astype(w2_ref.dtype))
    a2 = (jnp.dot(h1, w2_ref[...], preferred_element_type=jnp.float32)
          + b2_ref[...])
    h2 = jnp.tanh(a2.astype(w3_ref.dtype))
    y = (jnp.dot(h2, w3_ref[...], preferred_element_type=jnp.float32)
         + b3_ref[...])
    # forward() of StateIndependentPolicy applies a final tanh -- keep it f32.
    o_ref[...] = jnp.tanh(y).astype(o_ref.dtype)


def prepare_params(params, compute_dtype=jnp.bfloat16):
    """One-time weight prep (pad + cast).  Call once, reuse every forward.

    compute_dtype: jnp.bfloat16 (default; MXU fast path on all generations,
                   f32 accumulation) or jnp.float32 (exact).
    """
    w1, b1, w2, b2, w3, b3 = (params["w1"], params["b1"], params["w2"],
                              params["b2"], params["w3"], params["b3"])
    F, H1 = w1.shape
    H2 = w2.shape[1]
    A = w3.shape[1]
    # Lane-dense padding on layer-OUTPUT dims only; K of layer 1 stays at the
    # raw F (Mosaic handles K < 128 in a single MXU pass either way).
    H1p = _round_up(max(H1, _LANE), _LANE)
    H2p = _round_up(max(H2, _LANE), _LANE)
    Ap = _round_up(max(A, _LANE), _LANE)
    return {
        "w1": jnp.pad(w1, ((0, 0), (0, H1p - H1))).astype(compute_dtype),
        "b1": jnp.pad(b1, ((0, 0), (0, H1p - H1))).astype(jnp.float32),
        "w2": jnp.pad(w2, ((0, H1p - H1), (0, H2p - H2))).astype(compute_dtype),
        "b2": jnp.pad(b2, ((0, 0), (0, H2p - H2))).astype(jnp.float32),
        "w3": jnp.pad(w3, ((0, H2p - H2), (0, Ap - A))).astype(compute_dtype),
        "b3": jnp.pad(b3, ((0, 0), (0, Ap - A))).astype(jnp.float32),
        "action_dim": A,                      # static Python int
    }


@functools.partial(jax.jit, static_argnames=("action_dim", "tile_b"))
def _forward_impl(states, w1, b1, w2, b2, w3, b3, *, action_dim, tile_b):
    B, F = states.shape
    H1p = w1.shape[1]
    H2p = w2.shape[1]
    Ap = w3.shape[1]
    compute_dtype = w1.dtype

    # bf16 packs 16 rows per vreg; f32 packs 8 (avoids a relayout when grid>1)
    row_align = 16 if compute_dtype == jnp.bfloat16 else 8

    B_aligned = _round_up(B, row_align)
    tile_cap = min(tile_b, B_aligned)
    # v7x megacore: for large batches force >= 2 grid steps so the 'parallel'
    # batch axis shards across both TensorCores (costs only ~0.35us of loop
    # overhead on single-TC v5e/v6e).
    if B_aligned >= 2 * _LANE:
        tile_cap = min(tile_cap, _round_up(pl.cdiv(B_aligned, 2), _LANE))
    num_steps = pl.cdiv(B_aligned, tile_cap)
    tile = _round_up(pl.cdiv(B_aligned, num_steps), row_align)
    B_pad = num_steps * tile
    grid = (num_steps,)

    x = states
    if B_pad != B:                       # batch-only pad (F stays unpadded)
        x = jnp.pad(states, ((0, B_pad - B), (0, 0)))

    # Constant index_map => weight/bias tiles are DMA'd into VMEM once and
    # stay resident across grid steps.  Default double-buffering kept for
    # portability (pl.Buffered(1) would halve their ~1.4 MiB VMEM, but we
    # have >25 MiB of headroom even at tile_b=2048 on v7x).
    full = lambda shape: pl.BlockSpec(shape, lambda i: (0,) * len(shape))

    out = pl.pallas_call(
        _mlp_tanh_kernel,
        out_shape=jax.ShapeDtypeStruct((B_pad, Ap), jnp.float32),
        grid=grid,
        in_specs=[
            # states tile: last dim is the FULL feature dim (legal per the
            # (8,128) rule) -> no 8x-inflated HBM pad pass per call.
            pl.BlockSpec((tile, F), lambda i: (i, 0)),
            full((F, H1p)), full((1, H1p)),       # layer 1
            full((H1p, H2p)), full((1, H2p)),     # layer 2
            full((H2p, Ap)), full((1, Ap)),       # layer 3
        ],
        out_specs=pl.BlockSpec((tile, Ap), lambda i: (i, 0)),
        compiler_params=pltpu.CompilerParams(
            dimension_semantics=("parallel",)),
    )(x, w1, b1, w2, b2, w3, b3)

    # Slice off batch/lane padding.  (If a downstream op can consume the
    # padded (B_pad, Ap) slab directly, return `out` instead and fuse.)
    return out[:B, :action_dim]


def state_independent_policy_forward(states, prepared, *, tile_b=1024):
    """states: [B, F] f32 -> tanh-squashed action means [B, A] f32.

    prepared: output of prepare_params() (pad/cast done once, not per call).
    tile_b:   max batch rows per grid step.  Sweep 512-2048 for large B;
              1024 keeps grid overhead <~15% and VMEM at ~4 MiB.
    """
    return _forward_impl(
        states, prepared["w1"], prepared["b1"], prepared["w2"], prepared["b2"],
        prepared["w3"], prepared["b3"],
        action_dim=prepared["action_dim"], tile_b=tile_b)


def init_params(key, feature_dim, action_dim, net_arch=(256, 256)):
    """Deterministic synthetic init (shapes match the nn.Linear layers)."""
    h1, h2 = net_arch
    ks = jax.random.split(key, 6)

    def lin(kw, kb, fan_in, fan_out):
        bound = 1.0 / jnp.sqrt(fan_in)
        w = jax.random.uniform(kw, (fan_in, fan_out), jnp.float32,
                               -bound, bound)
        b = jax.random.uniform(kb, (1, fan_out), jnp.float32, -bound, bound)
        return w, b

    w1, b1 = lin(ks[0], ks[1], feature_dim, h1)
    w2, b2 = lin(ks[2], ks[3], h1, h2)
    w3, b3 = lin(ks[4], ks[5], h2, action_dim)
    # log_stds parameter of the policy (unused by forward(), kept for parity)
    log_stds = jnp.zeros((1, action_dim), jnp.float32)
    return {"w1": w1, "b1": b1, "w2": w2, "b2": b2, "w3": w3, "b3": b3,
            "log_stds": log_stds}


def _reference_forward(states, p):
    h1 = jnp.tanh(states @ p["w1"] + p["b1"])
    h2 = jnp.tanh(h1 @ p["w2"] + p["b2"])
    return jnp.tanh(h2 @ p["w3"] + p["b3"])


# TODO(synk): sample()/distribution()/evaluate_action() (TanhNormal sampling,
# log-prob) are not part of forward() and are not implemented here.

if __name__ == "__main__":
    key = jax.random.PRNGKey(0)
    k_par, k_x, k_x2 = jax.random.split(key, 3)

    feature_dim = 16   # observation feature size
    action_dim = 4     # gym.spaces.Box with shape (4,)
    batch = 16         # small demo batch -> single grid step

    params = init_params(k_par, feature_dim, action_dim, net_arch=(256, 256))
    states = jax.random.normal(k_x, (batch, feature_dim), jnp.float32)
    ref = _reference_forward(states, params)

    # f32 path (exact vs. reference)
    prep_f32 = prepare_params(params, compute_dtype=jnp.float32)
    out_f32 = jax.block_until_ready(
        state_independent_policy_forward(states, prep_f32))
    assert out_f32.shape == (batch, action_dim)
    assert jnp.allclose(out_f32, ref, atol=1e-5, rtol=1e-5), "f32 mismatch"

    # default bf16 MXU path (f32 accumulation, f32 biases, f32 final tanh)
    prep_bf16 = prepare_params(params)            # compute_dtype=bfloat16
    out_bf16 = jax.block_until_ready(
        state_independent_policy_forward(states, prep_bf16))
    assert out_bf16.shape == (batch, action_dim)
    assert jnp.allclose(out_bf16, ref, atol=5e-2, rtol=5e-2), "bf16 mismatch"

    # Ragged batch exercising batch padding + the >=2-step parallel grid path.
    batch2 = 300
    states2 = jax.random.normal(k_x2, (batch2, feature_dim), jnp.float32)
    ref2 = _reference_forward(states2, params)
    out2 = jax.block_until_ready(
        state_independent_policy_forward(states2, prep_f32))
    assert out2.shape == (batch2, action_dim)
    assert jnp.allclose(out2, ref2, atol=1e-5, rtol=1e-5), "multi-tile mismatch"

    print("KERNEL_OK")
</pallas_src>

<mosaic_0001>
module attributes {stable_mosaic.version = 11 : i64} {
  func.func @_mlp_tanh_kernel(%arg0: i32, %arg1: memref<16x16xf32, #tpu.memory_space<vmem>>, %arg2: memref<16x256xf32, #tpu.memory_space<vmem>>, %arg3: memref<1x256xf32, #tpu.memory_space<vmem>>, %arg4: memref<256x256xf32, #tpu.memory_space<vmem>>, %arg5: memref<1x256xf32, #tpu.memory_space<vmem>>, %arg6: memref<256x128xf32, #tpu.memory_space<vmem>>, %arg7: memref<1x128xf32, #tpu.memory_space<vmem>>, %arg8: memref<16x128xf32, #tpu.memory_space<vmem>>) attributes {dimension_semantics = [#tpu.dimension_semantics<parallel>], iteration_bounds = array<i64: 1>, scalar_prefetch = 0 : i64, scratch_operands = 0 : i64, tpu.core_type = #tpu.core_type<tc>, window_params = [{transform_indices = @transform_0, window_bounds = array<i64: 16, 16>}, {pipeline_mode = #tpu.pipeline_mode<synchronous>, transform_indices = @transform_1, window_bounds = array<i64: 16, 256>}, {pipeline_mode = #tpu.pipeline_mode<synchronous>, transform_indices = @transform_2, window_bounds = array<i64: 1, 256>}, {pipeline_mode = #tpu.pipeline_mode<synchronous>, transform_indices = @transform_3, window_bounds = array<i64: 256, 256>}, {pipeline_mode = #tpu.pipeline_mode<synchronous>, transform_indices = @transform_4, window_bounds = array<i64: 1, 256>}, {pipeline_mode = #tpu.pipeline_mode<synchronous>, transform_indices = @transform_5, window_bounds = array<i64: 256, 128>}, {pipeline_mode = #tpu.pipeline_mode<synchronous>, transform_indices = @transform_6, window_bounds = array<i64: 1, 128>}, {transform_indices = @transform_7, window_bounds = array<i64: 16, 128>}]} {
    %c0 = arith.constant 0 : index
    %c0_0 = arith.constant 0 : index
    %0 = vector.load %arg1[%c0, %c0_0] : memref<16x16xf32, #tpu.memory_space<vmem>>, vector<16x16xf32>
    %c0_1 = arith.constant 0 : index
    %c0_2 = arith.constant 0 : index
    %1 = vector.load %arg2[%c0_1, %c0_2] : memref<16x256xf32, #tpu.memory_space<vmem>>, vector<16x256xf32>
    %cst = arith.constant dense<0.000000e+00> : vector<16x256xf32>
    %2 = tpu.matmul %0, %1, %cst {dimension_numbers = #tpu.dot_dimension_numbers<[1], [0], [0], [1], [0, 0, 1, 1], [], []>} : vector<16x16xf32>, vector<16x256xf32>, vector<16x256xf32> -> vector<16x256xf32>
    %c0_3 = arith.constant 0 : index
    %c0_4 = arith.constant 0 : index
    %3 = vector.load %arg3[%c0_3, %c0_4] : memref<1x256xf32, #tpu.memory_space<vmem>>, vector<1x256xf32>
    %4 = vector.broadcast %3 : vector<1x256xf32> to vector<16x256xf32>
    %5 = arith.addf %2, %4 : vector<16x256xf32>
    %6 = math.tanh %5 : vector<16x256xf32>
    %c0_5 = arith.constant 0 : index
    %c0_6 = arith.constant 0 : index
    %7 = vector.load %arg4[%c0_5, %c0_6] : memref<256x256xf32, #tpu.memory_space<vmem>>, vector<256x256xf32>
    %cst_7 = arith.constant dense<0.000000e+00> : vector<16x256xf32>
    %8 = tpu.matmul %6, %7, %cst_7 {dimension_numbers = #tpu.dot_dimension_numbers<[1], [0], [0], [1], [0, 0, 1, 1], [], []>} : vector<16x256xf32>, vector<256x256xf32>, vector<16x256xf32> -> vector<16x256xf32>
    %c0_8 = arith.constant 0 : index
    %c0_9 = arith.constant 0 : index
    %9 = vector.load %arg5[%c0_8, %c0_9] : memref<1x256xf32, #tpu.memory_space<vmem>>, vector<1x256xf32>
    %10 = vector.broadcast %9 : vector<1x256xf32> to vector<16x256xf32>
    %11 = arith.addf %8, %10 : vector<16x256xf32>
    %12 = math.tanh %11 : vector<16x256xf32>
    %c0_10 = arith.constant 0 : index
    %c0_11 = arith.constant 0 : index
    %13 = vector.load %arg6[%c0_10, %c0_11] : memref<256x128xf32, #tpu.memory_space<vmem>>, vector<256x128xf32>
    %cst_12 = arith.constant dense<0.000000e+00> : vector<16x128xf32>
    %14 = tpu.matmul %12, %13, %cst_12 {dimension_numbers = #tpu.dot_dimension_numbers<[1], [0], [0], [1], [0, 0, 1, 1], [], []>} : vector<16x256xf32>, vector<256x128xf32>, vector<16x128xf32> -> vector<16x128xf32>
    %c0_13 = arith.constant 0 : index
    %c0_14 = arith.constant 0 : index
    %15 = vector.load %arg7[%c0_13, %c0_14] : memref<1x128xf32, #tpu.memory_space<vmem>>, vector<1x128xf32>
    %16 = vector.broadcast %15 : vector<1x128xf32> to vector<16x128xf32>
    %17 = arith.addf %14, %16 : vector<16x128xf32>
    %18 = math.tanh %17 : vector<16x128xf32>
    %c0_15 = arith.constant 0 : index
    %c0_16 = arith.constant 0 : index
    %19 = vector.load %arg8[%c0_15, %c0_16] : memref<16x128xf32, #tpu.memory_space<vmem>>, vector<16x128xf32>
    tpu.vector_store %arg8[%c0_15, %c0_16], %18 {strides = array<i32>} : memref<16x128xf32, #tpu.memory_space<vmem>>, vector<16x128xf32>,
    return
  }
  func.func @transform_0(%arg0: i32) -> (i32, i32) {
    %c0_i32 = arith.constant 0 : i32
    %c0_i32_0 = arith.constant 0 : i32
    return %arg0, %c0_i32 : i32, i32
  }
  func.func @transform_1(%arg0: i32) -> (i32, i32) {
    %c0_i32 = arith.constant 0 : i32
    %c0_i32_0 = arith.constant 0 : i32
    %c0_i32_1 = arith.constant 0 : i32
    return %c0_i32, %c0_i32_0 : i32, i32
  }
  func.func @transform_2(%arg0: i32) -> (i32, i32) {
    %c0_i32 = arith.constant 0 : i32
    %c0_i32_0 = arith.constant 0 : i32
    %c0_i32_1 = arith.constant 0 : i32
    return %c0_i32, %c0_i32_0 : i32, i32
  }
  func.func @transform_3(%arg0: i32) -> (i32, i32) {
    %c0_i32 = arith.constant 0 : i32
    %c0_i32_0 = arith.constant 0 : i32
    %c0_i32_1 = arith.constant 0 : i32
    return %c0_i32, %c0_i32_0 : i32, i32
  }
  func.func @transform_4(%arg0: i32) -> (i32, i32) {
    %c0_i32 = arith.constant 0 : i32
    %c0_i32_0 = arith.constant 0 : i32
    %c0_i32_1 = arith.constant 0 : i32
    return %c0_i32, %c0_i32_0 : i32, i32
  }
  func.func @transform_5(%arg0: i32) -> (i32, i32) {
    %c0_i32 = arith.constant 0 : i32
    %c0_i32_0 = arith.constant 0 : i32
    %c0_i32_1 = arith.constant 0 : i32
    return %c0_i32, %c0_i32_0 : i32, i32
  }
  func.func @transform_6(%arg0: i32) -> (i32, i32) {
    %c0_i32 = arith.constant 0 : i32
    %c0_i32_0 = arith.constant 0 : i32
    %c0_i32_1 = arith.constant 0 : i32
    return %c0_i32, %c0_i32_0 : i32, i32
  }
  func.func @transform_7(%arg0: i32) -> (i32, i32) {
    %c0_i32 = arith.constant 0 : i32
    %c0_i32_0 = arith.constant 0 : i32
    return %arg0, %c0_i32 : i32, i32
  }
}

</mosaic_0001>

<llo_original>
// kernel: _forward_impl.1
$region0: #{_forward_impl.1}
  #allocation0 [shape = 'u32[]', space=smem, size = 0x4, offset = 0x4, fixed_abs, tag = 'smem constant byte address 0x4 - core index']
  #allocation1 [shape = 'u32[144,128]{1,0:T(1,128)}', space=vmem, size = 0x12000, scoped, tag = 'internal scratch']
  %s0 = inlined_call_operand.hbm [shape: f32[16,16], index: 0, kind: input, shape index: {}]
  %s1 = inlined_call_operand.hbm [shape: f32[16,256], index: 1, kind: input, shape index: {}]
  %s2 = inlined_call_operand.vmem [shape: f32[1,256], index: 2, kind: input, shape index: {}]
  %s3 = inlined_call_operand.hbm [shape: f32[256,256], index: 3, kind: input, shape index: {}]
  %s4 = inlined_call_operand.vmem [shape: f32[1,256], index: 4, kind: input, shape index: {}]
  %s5 = inlined_call_operand.hbm [shape: f32[256,128], index: 5, kind: input, shape index: {}]
  %s6 = inlined_call_operand.vmem [shape: f32[1,128], index: 6, kind: input, shape index: {}]
  %s7 = inlined_call_operand.vmem [shape: f32[16,128], index: 7, kind: output, shape index: {}]
  %s8 = sld [smem:[#allocation0]]
  $region54: #{_forward_impl.1} parent=0
    _
  %s10 = ssub.s32 1, %s8
  %s11 = scalar_select 0, %s10, %s8
  $region1: #{_forward_impl.1} parent=0
    #allocation2 [shape = 'u8[8192]{0}', space=vmem, size = 0x2000, scoped, tag = 'input window, operand 0, single buffered']
    #allocation3 [shape = 's32[1]{0}', space=sflag, size = 0x4, scoped, tag = 'scoped memory for _forward_impl.1']
    #allocation4 [shape = 'u8[16384]{0}', space=vmem, size = 0x4000, scoped, tag = 'input window, operand 1, single buffered']
    #allocation5 [shape = 's32[1]{0}', space=sflag, size = 0x4, scoped, tag = 'scoped memory for _forward_impl.1']
    #allocation6 [shape = 'u8[262144]{0}', space=vmem, size = 0x40000, scoped, tag = 'input window, operand 3, single buffered']
    #allocation7 [shape = 'u8[131072]{0}', space=vmem, size = 0x20000, scoped, tag = 'input window, operand 5, single buffered']
    #allocation8 [shape = 's32[1]{0}', space=sflag, size = 0x4, scoped, tag = 'scoped memory for _forward_impl.1']
    %12 = vsyncpa [#allocation3], 0
    %13 = vsyncpa [#allocation5], 0
    %14 = vsyncpa [#allocation8], 0
    // Predicated region
    $region2: #{_forward_impl.1} parent=1 // pred_check
      _
    $region3: #{_forward_impl.1} parent=1 // pred_check_branch
      %16 = sbr.rel (0) target = $region5
    $region4: #{_forward_impl.1} parent=1 // pred_region
      %s18 = ssub.s32 256, 256
      %19 = vsyncadd [#allocation3], %s18
      %s20 = sshll.u32 [#allocation2], 4
      %s21 = int_to_ptr.vmem [resolvable:$true] %s20
      %26 = dma.hbm_to_vmem [thread:$0]  %s0, 256, %s21, [#allocation3], 128, 128, 8
    $region5: #{_forward_impl.1} parent=1 // pred_fallthru
      _
    // Predicated region
    $region6: #{_forward_impl.1} parent=1 // pred_check
      _
    $region7: #{_forward_impl.1} parent=1 // pred_check_branch
      %28 = sbr.rel (0) target = $region9
    $region8: #{_forward_impl.1} parent=1 // pred_region
      %s30 = ssub.s32 512, 512
      %31 = vsyncadd [#allocation5], %s30
      %s32 = sshll.u32 [#allocation4], 4
      %s33 = int_to_ptr.vmem [resolvable:$true] %s32
      %38 = dma.hbm_to_vmem [thread:$0]  %s1, 512, %s33, [#allocation5], 256, 256, 16
    $region9: #{_forward_impl.1} parent=1 // pred_fallthru
      _
    // Predicated region
    $region10: #{_forward_impl.1} parent=1 // pred_check
      _
    $region11: #{_forward_impl.1} parent=1 // pred_check_branch
      %40 = sbr.rel (0) target = $region13
    $region12: #{_forward_impl.1} parent=1 // pred_region
      _
    $region13: #{_forward_impl.1} parent=1 // pred_fallthru
      _
    // Predicated region
    $region14: #{_forward_impl.1} parent=1 // pred_check
      _
    $region15: #{_forward_impl.1} parent=1 // pred_check_branch
      %42 = sbr.rel (0) target = $region17
    $region16: #{_forward_impl.1} parent=1 // pred_region
      %s44 = ssub.s32 8192, 8192
      %45 = vsyncadd [#allocation5], %s44
      %s46 = sshll.u32 [#allocation6], 4
      %s47 = int_to_ptr.vmem [resolvable:$true] %s46
      %52 = dma.hbm_to_vmem [thread:$0]  %s3, 8192, %s47, [#allocation5], 256, 256, 16
    $region17: #{_forward_impl.1} parent=1 // pred_fallthru
      _
    // Predicated region
    $region18: #{_forward_impl.1} parent=1 // pred_check
      _
    $region19: #{_forward_impl.1} parent=1 // pred_check_branch
      %54 = sbr.rel (0) target = $region21
    $region20: #{_forward_impl.1} parent=1 // pred_region
      _
    $region21: #{_forward_impl.1} parent=1 // pred_fallthru
      _
    // Predicated region
    $region22: #{_forward_impl.1} parent=1 // pred_check
      _
    $region23: #{_forward_impl.1} parent=1 // pred_check_branch
      %56 = sbr.rel (0) target = $region25
    $region24: #{_forward_impl.1} parent=1 // pred_region
      %s58 = ssub.s32 4096, 4096
      %59 = vsyncadd [#allocation8], %s58
      %s60 = sshll.u32 [#allocation7], 4
      %s61 = int_to_ptr.vmem [resolvable:$true] %s60
      %66 = dma.hbm_to_vmem [thread:$0]  %s5, 4096, %s61, [#allocation8], 128, 128, 8
    $region25: #{_forward_impl.1} parent=1 // pred_fallthru
      _
    // Predicated region
    $region26: #{_forward_impl.1} parent=1 // pred_check
      _
    $region27: #{_forward_impl.1} parent=1 // pred_check_branch
      %68 = sbr.rel (0) target = $region29
    $region28: #{_forward_impl.1} parent=1 // pred_region
      _
    $region29: #{_forward_impl.1} parent=1 // pred_fallthru
      _
    // Predicated region
    $region30: #{_forward_impl.1} parent=1 // pred_check
      _
    $region31: #{_forward_impl.1} parent=1 // pred_check_branch
      %70 = sbr.rel (0) target = $region33
    $region32: #{_forward_impl.1} parent=1 // pred_region
      %71 = dma.done [#allocation3], 256
    $region33: #{_forward_impl.1} parent=1 // pred_fallthru
      _
    // Predicated region
    $region34: #{_forward_impl.1} parent=1 // pred_check
      _
    $region35: #{_forward_impl.1} parent=1 // pred_check_branch
      %73 = sbr.rel (0) target = $region37
    $region36: #{_forward_impl.1} parent=1 // pred_region
      %74 = dma.done [#allocation5], 512
    $region37: #{_forward_impl.1} parent=1 // pred_fallthru
      _
    // Predicated region
    $region38: #{_forward_impl.1} parent=1 // pred_check
      _
    $region39: #{_forward_impl.1} parent=1 // pred_check_branch
      %76 = sbr.rel (0) target = $region41
    $region40: #{_forward_impl.1} parent=1 // pred_region
      %77 = dma.done [#allocation5], 8192
    $region41: #{_forward_impl.1} parent=1 // pred_fallthru
      _
    // Predicated region
    $region42: #{_forward_impl.1} parent=1 // pred_check
      _
    $region43: #{_forward_impl.1} parent=1 // pred_check_branch
      %79 = sbr.rel (0) target = $region45
    $region44: #{_forward_impl.1} parent=1 // pred_region
      %80 = dma.done [#allocation8], 4096
    $region45: #{_forward_impl.1} parent=1 // pred_fallthru
      _
    %v81 = vld [vmem:[#allocation2] sm:$0xff]
    %v82 = vld [vmem:[#allocation2 + $0x8] sm:$0xff]
    %v83 = vld [vmem:[#allocation4] sm:$0xff]
    %v84 = vld [vmem:[#allocation4 + $0x8] sm:$0xff]
    %v85 = vld [vmem:[#allocation4 + $0x10] sm:$0xff]
    %v86 = vld [vmem:[#allocation4 + $0x18] sm:$0xff]
    %v87 = vld [vmem:[%s2] sm:$0x3]
    %v89 = vlaneseq
    %v90 = vshrl.u32 %v89, 7
    %v91 = vsub.s32 0, %v90
    %v92 = vrot.slane %v87, %v91
    %v93 = vlaneseq
    %v94 = vshrl.u32 %v93, 7
    %v95 = vsub.s32 1, %v94
    %v96 = vrot.slane %v87, %v95
    %vm99 = vcmask 130048
    %v101 = vsel %vm99, %v81, 0
    %v104 = vsel %vm99, %v82, 0
    %106 = vmatprep.subr.mxu0 %v84
    %107 = vmatpush1.msra.mxu0 %v83
    %108 = vmatprep.subr.mxu0 %v86
    %109 = vmatpush1.msra.mxu0 %v85
    %110 = vmatprep.subr.mxu0 0.0
    %111 = vmatpush1.msra.mxu0 0.0
    %112 = vmatprep.subr.mxu0 0.0
    %113 = vmatpush1.msra.mxu0 0.0
    %114 = vmatprep.subr.mxu0 0.0
    %115 = vmatpush1.msra.mxu0 0.0
    %116 = vmatprep.subr.mxu0 0.0
    %117 = vmatpush1.msra.mxu0 0.0
    %118 = vmatprep.subr.mxu0 0.0
    %119 = vmatpush1.msra.mxu0 0.0
    %120 = vmatprep.subr.mxu0 0.0
    %121 = vmatpush1.msra.mxu0 0.0
    %122 = vmatprep.subr.mxu0 0.0
    %123 = vmatpush1.msra.mxu0 0.0
    %124 = vmatprep.subr.mxu0 0.0
    %125 = vmatpush1.msra.mxu0 0.0
    %126 = vmatprep.subr.mxu0 0.0
    %127 = vmatpush1.msra.mxu0 0.0
    %128 = vmatprep.subr.mxu0 0.0
    %129 = vmatpush1.msra.mxu0 0.0
    %130 = vmatprep.subr.mxu0 0.0
    %131 = vmatpush1.msra.mxu0 0.0
    %132 = vmatprep.subr.mxu0 0.0
    %133 = vmatpush1.msra.mxu0 0.0
    %134 = vmatprep.subr.mxu0 0.0
    %135 = vmatpush1.msra.mxu0 0.0
    %136 = vmatprep.subr.mxu0 0.0
    %137 = vmatpush1.msra.mxu0 0.0
    %138 = vmatprep.subr.mxu0 0.0
    %139 = vmatpush1.msra.mxu0 0.0
    %140 = vmatprep.subr.mxu0 0.0
    %141 = vmatpush1.msra.mxu0 0.0
    %142 = vmatprep.subr.mxu0 0.0
    %143 = vmatpush1.msra.mxu0 0.0
    %144 = vmatprep.subr.mxu0 0.0
    %145 = vmatpush1.msra.mxu0 0.0
    %146 = vmatprep.subr.mxu0 0.0
    %147 = vmatpush1.msra.mxu0 0.0
    %148 = vmatprep.subr.mxu0 0.0
    %149 = vmatpush1.msra.mxu0 0.0
    %150 = vmatprep.subr.mxu0 0.0
    %151 = vmatpush1.msra.mxu0 0.0
    %152 = vmatprep.subr.mxu0 0.0
    %153 = vmatpush1.msra.mxu0 0.0
    %154 = vmatprep.subr.mxu0 0.0
    %155 = vmatpush1.msra.mxu0 0.0
    %156 = vmatprep.subr.mxu0 0.0
    %157 = vmatpush1.msra.mxu0 0.0
    %158 = vmatprep.subr.mxu0 0.0
    %159 = vmatpush1.msra.mxu0 0.0
    %160 = vmatprep.subr.mxu0 0.0
    %161 = vmatpush1.msra.mxu0 0.0
    %162 = vmatprep.subr.mxu0 0.0
    %163 = vmatpush1.msra.mxu0 0.0
    %164 = vmatprep.subr.mxu0 0.0
    %165 = vmatpush1.msra.mxu0 0.0
    %166 = vmatprep.subr.mxu0 0.0
    %167 = vmatpush1.msra.mxu0 0.0
    %168 = vmatprep.subr.mxu0 0.0
    %169 = vmatpush1.msra.mxu0 0.0
    %170 = vmatprep.mubr.f32.mxu0 0.0
    %171 = vmatmul.mubr.f32.gmra.mrb[0].mxu0 %v101
    %v172 = vpop.f32.mrb[0].mxu0
    %v173 = vadd.f32 %v92, %v172
    %v174 = vpop.f32.mrb[0].mxu0
    %v175 = vadd.f32 %v96, %v174
    %176 = vmatprep.mubr.f32.mxu0 0.0
    %177 = vmatmul.mubr.f32.gmra.mrb[0].mxu0 %v104
    %v178 = vpop.f32.mrb[0].mxu0
    %v179 = vadd.f32 %v92, %v178
    %v180 = vpop.f32.mrb[0].mxu0
    %v181 = vadd.f32 %v96, %v180
    %182 = vdwg.mxu0
    %v183 = vtanh.pop %v173
    %v184 = vtanh.pop %v175
    %v185 = vtanh.pop %v179
    %v186 = vtanh.pop %v181
    %v187 = vld [vmem:[#allocation6] sm:$0xff]
    %v188 = vld [vmem:[#allocation6 + $0x8] sm:$0xff]
    %v189 = vld [vmem:[#allocation6 + $0x10] sm:$0xff]
    %v190 = vld [vmem:[#allocation6 + $0x18] sm:$0xff]
    %v191 = vld [vmem:[#allocation6 + $0x20] sm:$0xff]
    %v192 = vld [vmem:[#allocation6 + $0x28] sm:$0xff]
    %v193 = vld [vmem:[#allocation6 + $0x30] sm:$0xff]
    %v194 = vld [vmem:[#allocation6 + $0x38] sm:$0xff]
    %v195 = vld [vmem:[#allocation6 + $0x40] sm:$0xff]
    %v196 = vld [vmem:[#allocation6 + $0x48] sm:$0xff]
    %v197 = vld [vmem:[#allocation6 + $0x50] sm:$0xff]
    %v198 = vld [vmem:[#allocation6 + $0x58] sm:$0xff]
    %v199 = vld [vmem:[#allocation6 + $0x60] sm:$0xff]
    %v200 = vld [vmem:[#allocation6 + $0x68] sm:$0xff]
    %v201 = vld [vmem:[#allocation6 + $0x70] sm:$0xff]
    %v202 = vld [vmem:[#allocation6 + $0x78] sm:$0xff]
    %v203 = vld [vmem:[#allocation6 + $0x80] sm:$0xff]
    %v204 = vld [vmem:[#allocation6 + $0x88] sm:$0xff]
    %v205 = vld [vmem:[#allocation6 + $0x90] sm:$0xff]
    %v206 = vld [vmem:[#allocation6 + $0x98] sm:$0xff]
    %v207 = vld [vmem:[#allocation6 + $0xa0] sm:$0xff]
    %v208 = vld [vmem:[#allocation6 + $0xa8] sm:$0xff]
    %v209 = vld [vmem:[#allocation6 + $0xb0] sm:$0xff]
    %v210 = vld [vmem:[#allocation6 + $0xb8] sm:$0xff]
    %v211 = vld [vmem:[#allocation6 + $0xc0] sm:$0xff]
    %v212 = vld [vmem:[#allocation6 + $0xc8] sm:$0xff]
    %v213 = vld [vmem:[#allocation6 + $0xd0] sm:$0xff]
    %v214 = vld [vmem:[#allocation6 + $0xd8] sm:$0xff]
    %v215 = vld [vmem:[#allocation6 + $0xe0] sm:$0xff]
    %v216 = vld [vmem:[#allocation6 + $0xe8] sm:$0xff]
    %v217 = vld [vmem:[#allocation6 + $0xf0] sm:$0xff]
    %v218 = vld [vmem:[#allocation6 + $0xf8] sm:$0xff]
    %v219 = vld [vmem:[#allocation6 + $0x100] sm:$0xff]
    %v220 = vld [vmem:[#allocation6 + $0x108] sm:$0xff]
    %v221 = vld [vmem:[#allocation6 + $0x110] sm:$0xff]
    %v222 = vld [vmem:[#allocation6 + $0x118] sm:$0xff]
    %v223 = vld [vmem:[#allocation6 + $0x120] sm:$0xff]
    %v224 = vld [vmem:[#allocation6 + $0x128] sm:$0xff]
    %v225 = vld [vmem:[#allocation6 + $0x130] sm:$0xff]
    %v226 = vld [vmem:[#allocation6 + $0x138] sm:$0xff]
    %v227 = vld [vmem:[#allocation6 + $0x140] sm:$0xff]
    %v228 = vld [vmem:[#allocation6 + $0x148] sm:$0xff]
    %v229 = vld [vmem:[#allocation6 + $0x150] sm:$0xff]
    %v230 = vld [vmem:[#allocation6 + $0x158] sm:$0xff]
    %v231 = vld [vmem:[#allocation6 + $0x160] sm:$0xff]
    %v232 = vld [vmem:[#allocation6 + $0x168] sm:$0xff]
    %v233 = vld [vmem:[#allocation6 + $0x170] sm:$0xff]
    %v234 = vld [vmem:[#allocation6 + $0x178] sm:$0xff]
    %v235 = vld [vmem:[#allocation6 + $0x180] sm:$0xff]
    %v236 = vld [vmem:[#allocation6 + $0x188] sm:$0xff]
    %v237 = vld [vmem:[#allocation6 + $0x190] sm:$0xff]
    %v238 = vld [vmem:[#allocation6 + $0x198] sm:$0xff]
    %v239 = vld [vmem:[#allocation6 + $0x1a0] sm:$0xff]
    %v240 = vld [vmem:[#allocation6 + $0x1a8] sm:$0xff]
    %v241 = vld [vmem:[#allocation6 + $0x1b0] sm:$0xff]
    %v242 = vld [vmem:[#allocation6 + $0x1b8] sm:$0xff]
    %v243 = vld [vmem:[#allocation6 + $0x1c0] sm:$0xff]
    %v244 = vld [vmem:[#allocation6 + $0x1c8] sm:$0xff]
    %v245 = vld [vmem:[#allocation6 + $0x1d0] sm:$0xff]
    %v246 = vld [vmem:[#allocation6 + $0x1d8] sm:$0xff]
    %v247 = vld [vmem:[#allocation6 + $0x1e0] sm:$0xff]
    %v248 = vld [vmem:[#allocation6 + $0x1e8] sm:$0xff]
    %v249 = vld [vmem:[#allocation6 + $0x1f0] sm:$0xff]
    %v250 = vld [vmem:[#allocation6 + $0x1f8] sm:$0xff]
    %v251 = vld [vmem:[%s4] sm:$0x3]
    %v253 = vlaneseq
    %v254 = vshrl.u32 %v253, 7
    %v255 = vsub.s32 0, %v254
    %v256 = vrot.slane %v251, %v255
    %v257 = vlaneseq
    %v258 = vshrl.u32 %v257, 7
    %v259 = vsub.s32 1, %v258
    %v260 = vrot.slane %v251, %v259
    %263 = vmatprep.subr.mxu0 %v188
    %264 = vmatpush1.msra.mxu0 %v187
    %265 = vmatprep.subr.mxu0 %v190
    %266 = vmatpush1.msra.mxu0 %v189
    %267 = vmatprep.subr.mxu0 %v192
    %268 = vmatpush1.msra.mxu0 %v191
    %269 = vmatprep.subr.mxu0 %v194
    %270 = vmatpush1.msra.mxu0 %v193
    %271 = vmatprep.subr.mxu0 %v196
    %272 = vmatpush1.msra.mxu0 %v195
    %273 = vmatprep.subr.mxu0 %v198
    %274 = vmatpush1.msra.mxu0 %v197
    %275 = vmatprep.subr.mxu0 %v200
    %276 = vmatpush1.msra.mxu0 %v199
    %277 = vmatprep.subr.mxu0 %v202
    %278 = vmatpush1.msra.mxu0 %v201
    %279 = vmatprep.subr.mxu0 %v204
    %280 = vmatpush1.msra.mxu0 %v203
    %281 = vmatprep.subr.mxu0 %v206
    %282 = vmatpush1.msra.mxu0 %v205
    %283 = vmatprep.subr.mxu0 %v208
    %284 = vmatpush1.msra.mxu0 %v207
    %285 = vmatprep.subr.mxu0 %v210
    %286 = vmatpush1.msra.mxu0 %v209
    %287 = vmatprep.subr.mxu0 %v212
    %288 = vmatpush1.msra.mxu0 %v211
    %289 = vmatprep.subr.mxu0 %v214
    %290 = vmatpush1.msra.mxu0 %v213
    %291 = vmatprep.subr.mxu0 %v216
    %292 = vmatpush1.msra.mxu0 %v215
    %293 = vmatprep.subr.mxu0 %v218
    %294 = vmatpush1.msra.mxu0 %v217
    %295 = vmatprep.subr.mxu0 %v220
    %296 = vmatpush1.msra.mxu0 %v219
    %297 = vmatprep.subr.mxu0 %v222
    %298 = vmatpush1.msra.mxu0 %v221
    %299 = vmatprep.subr.mxu0 %v224
    %300 = vmatpush1.msra.mxu0 %v223
    %301 = vmatprep.subr.mxu0 %v226
    %302 = vmatpush1.msra.mxu0 %v225
    %303 = vmatprep.subr.mxu0 %v228
    %304 = vmatpush1.msra.mxu0 %v227
    %305 = vmatprep.subr.mxu0 %v230
    %306 = vmatpush1.msra.mxu0 %v229
    %307 = vmatprep.subr.mxu0 %v232
    %308 = vmatpush1.msra.mxu0 %v231
    %309 = vmatprep.subr.mxu0 %v234
    %310 = vmatpush1.msra.mxu0 %v233
    %311 = vmatprep.subr.mxu0 %v236
    %312 = vmatpush1.msra.mxu0 %v235
    %313 = vmatprep.subr.mxu0 %v238
    %314 = vmatpush1.msra.mxu0 %v237
    %315 = vmatprep.subr.mxu0 %v240
    %316 = vmatpush1.msra.mxu0 %v239
    %317 = vmatprep.subr.mxu0 %v242
    %318 = vmatpush1.msra.mxu0 %v241
    %319 = vmatprep.subr.mxu0 %v244
    %320 = vmatpush1.msra.mxu0 %v243
    %321 = vmatprep.subr.mxu0 %v246
    %322 = vmatpush1.msra.mxu0 %v245
    %323 = vmatprep.subr.mxu0 %v248
    %324 = vmatpush1.msra.mxu0 %v247
    %325 = vmatprep.subr.mxu0 %v250
    %326 = vmatpush1.msra.mxu0 %v249
    %327 = vmatprep.mubr.f32.mxu0 %v184
    %328 = vmatmul.mubr.f32.gmra.mrb[0].mxu0 %v183
    %v329 = vpop.f32.mrb[0].mxu0
    %v330 = vadd.f32 %v256, %v329
    %v331 = vpop.f32.mrb[0].mxu0
    %v332 = vadd.f32 %v260, %v331
    %333 = vmatprep.mubr.f32.mxu0 %v186
    %334 = vmatmul.mubr.f32.gmra.mrb[0].mxu0 %v185
    %v335 = vpop.f32.mrb[0].mxu0
    %v336 = vadd.f32 %v256, %v335
    %v337 = vpop.f32.mrb[0].mxu0
    %v338 = vadd.f32 %v260, %v337
    %339 = vdwg.mxu0
    %v340 = vtanh.pop %v330
    %v341 = vtanh.pop %v332
    %v342 = vtanh.pop %v336
    %v343 = vtanh.pop %v338
    %v344 = vld [vmem:[#allocation7] sm:$0xff]
    %v345 = vld [vmem:[#allocation7 + $0x8] sm:$0xff]
    %v346 = vld [vmem:[#allocation7 + $0x10] sm:$0xff]
    %v347 = vld [vmem:[#allocation7 + $0x18] sm:$0xff]
    %v348 = vld [vmem:[#allocation7 + $0x20] sm:$0xff]
    %v349 = vld [vmem:[#allocation7 + $0x28] sm:$0xff]
    %v350 = vld [vmem:[#allocation7 + $0x30] sm:$0xff]
    %v351 = vld [vmem:[#allocation7 + $0x38] sm:$0xff]
    %v352 = vld [vmem:[#allocation7 + $0x40] sm:$0xff]
    %v353 = vld [vmem:[#allocation7 + $0x48] sm:$0xff]
    %v354 = vld [vmem:[#allocation7 + $0x50] sm:$0xff]
    %v355 = vld [vmem:[#allocation7 + $0x58] sm:$0xff]
    %v356 = vld [vmem:[#allocation7 + $0x60] sm:$0xff]
    %v357 = vld [vmem:[#allocation7 + $0x68] sm:$0xff]
    %v358 = vld [vmem:[#allocation7 + $0x70] sm:$0xff]
    %v359 = vld [vmem:[#allocation7 + $0x78] sm:$0xff]
    %v360 = vld [vmem:[#allocation7 + $0x80] sm:$0xff]
    %v361 = vld [vmem:[#allocation7 + $0x88] sm:$0xff]
    %v362 = vld [vmem:[#allocation7 + $0x90] sm:$0xff]
    %v363 = vld [vmem:[#allocation7 + $0x98] sm:$0xff]
    %v364 = vld [vmem:[#allocation7 + $0xa0] sm:$0xff]
    %v365 = vld [vmem:[#allocation7 + $0xa8] sm:$0xff]
    %v366 = vld [vmem:[#allocation7 + $0xb0] sm:$0xff]
    %v367 = vld [vmem:[#allocation7 + $0xb8] sm:$0xff]
    %v368 = vld [vmem:[#allocation7 + $0xc0] sm:$0xff]
    %v369 = vld [vmem:[#allocation7 + $0xc8] sm:$0xff]
    %v370 = vld [vmem:[#allocation7 + $0xd0] sm:$0xff]
    %v371 = vld [vmem:[#allocation7 + $0xd8] sm:$0xff]
    %v372 = vld [vmem:[#allocation7 + $0xe0] sm:$0xff]
    %v373 = vld [vmem:[#allocation7 + $0xe8] sm:$0xff]
    %v374 = vld [vmem:[#allocation7 + $0xf0] sm:$0xff]
    %v375 = vld [vmem:[#allocation7 + $0xf8] sm:$0xff]
    %v376 = vld [vmem:[%s6] sm:$0x1]
    %v378 = vlaneseq
    %v379 = vshrl.u32 %v378, 7
    %v380 = vsub.s32 0, %v379
    %v381 = vrot.slane %v376, %v380
    %383 = vmatprep.subr.mxu0 0.0
    %384 = vmatpush1.msra.mxu0 %v344
    %385 = vmatprep.subr.mxu0 0.0
    %386 = vmatpush1.msra.mxu0 %v345
    %387 = vmatprep.subr.mxu0 0.0
    %388 = vmatpush1.msra.mxu0 %v346
    %389 = vmatprep.subr.mxu0 0.0
    %390 = vmatpush1.msra.mxu0 %v347
    %391 = vmatprep.subr.mxu0 0.0
    %392 = vmatpush1.msra.mxu0 %v348
    %393 = vmatprep.subr.mxu0 0.0
    %394 = vmatpush1.msra.mxu0 %v349
    %395 = vmatprep.subr.mxu0 0.0
    %396 = vmatpush1.msra.mxu0 %v350
    %397 = vmatprep.subr.mxu0 0.0
    %398 = vmatpush1.msra.mxu0 %v351
    %399 = vmatprep.subr.mxu0 0.0
    %400 = vmatpush1.msra.mxu0 %v352
    %401 = vmatprep.subr.mxu0 0.0
    %402 = vmatpush1.msra.mxu0 %v353
    %403 = vmatprep.subr.mxu0 0.0
    %404 = vmatpush1.msra.mxu0 %v354
    %405 = vmatprep.subr.mxu0 0.0
    %406 = vmatpush1.msra.mxu0 %v355
    %407 = vmatprep.subr.mxu0 0.0
    %408 = vmatpush1.msra.mxu0 %v356
    %409 = vmatprep.subr.mxu0 0.0
    %410 = vmatpush1.msra.mxu0 %v357
    %411 = vmatprep.subr.mxu0 0.0
    %412 = vmatpush1.msra.mxu0 %v358
    %413 = vmatprep.subr.mxu0 0.0
    %414 = vmatpush1.msra.mxu0 %v359
    %415 = vmatprep.subr.mxu0 0.0
    %416 = vmatpush1.msra.mxu0 %v360
    %417 = vmatprep.subr.mxu0 0.0
    %418 = vmatpush1.msra.mxu0 %v361
    %419 = vmatprep.subr.mxu0 0.0
    %420 = vmatpush1.msra.mxu0 %v362
    %421 = vmatprep.subr.mxu0 0.0
    %422 = vmatpush1.msra.mxu0 %v363
    %423 = vmatprep.subr.mxu0 0.0
    %424 = vmatpush1.msra.mxu0 %v364
    %425 = vmatprep.subr.mxu0 0.0
    %426 = vmatpush1.msra.mxu0 %v365
    %427 = vmatprep.subr.mxu0 0.0
    %428 = vmatpush1.msra.mxu0 %v366
    %429 = vmatprep.subr.mxu0 0.0
    %430 = vmatpush1.msra.mxu0 %v367
    %431 = vmatprep.subr.mxu0 0.0
    %432 = vmatpush1.msra.mxu0 %v368
    %433 = vmatprep.subr.mxu0 0.0
    %434 = vmatpush1.msra.mxu0 %v369
    %435 = vmatprep.subr.mxu0 0.0
    %436 = vmatpush1.msra.mxu0 %v370
    %437 = vmatprep.subr.mxu0 0.0
    %438 = vmatpush1.msra.mxu0 %v371
    %439 = vmatprep.subr.mxu0 0.0
    %440 = vmatpush1.msra.mxu0 %v372
    %441 = vmatprep.subr.mxu0 0.0
    %442 = vmatpush1.msra.mxu0 %v373
    %443 = vmatprep.subr.mxu0 0.0
    %444 = vmatpush1.msra.mxu0 %v374
    %445 = vmatprep.subr.mxu0 0.0
    %446 = vmatpush1.msra.mxu0 %v375
    %447 = vmatprep.mubr.f32.mxu0 %v341
    %448 = vmatmul.mubr.f32.gmra.mrb[0].mxu0 %v340
    %v449 = vpop.f32.mrb[0].mxu0
    %v450 = vadd.f32 %v381, %v449
    %v451 = vpop.f32.mrb[0].mxu0
    %452 = vmatprep.mubr.f32.mxu0 %v343
    %453 = vmatmul.mubr.f32.gmra.mrb[0].mxu0 %v342
    %v454 = vpop.f32.mrb[0].mxu0
    %v455 = vadd.f32 %v381, %v454
    %v456 = vpop.f32.mrb[0].mxu0
    %457 = vdwg.mxu0
    %v458 = vtanh.pop %v450
    %v459 = vtanh.pop %v455
    %460 = vst [vmem:[%s7] sm:$0xff] %v458
    %461 = vst [vmem:[%s7 + $0x8] sm:$0xff] %v459
    // Predicated region
    $region46: #{_forward_impl.1} parent=1 // pred_check
      _
    $region47: #{_forward_impl.1} parent=1 // pred_check_branch
      %463 = sbr.rel (0) target = $region49
    $region48: #{_forward_impl.1} parent=1 // pred_region
      _
    $region49: #{_forward_impl.1} parent=1 // pred_fallthru
      _
    // Predicated region
    $region50: #{_forward_impl.1} parent=1 // pred_check
      _
    $region51: #{_forward_impl.1} parent=1 // pred_check_branch
      %465 = sbr.rel (0) target = $region53
    $region52: #{_forward_impl.1} parent=1 // pred_region
      _
    $region53: #{_forward_impl.1} parent=1 // pred_fallthru
      _
    %466 = vsyncpa [#allocation3], 1
    %467 = vsyncpa [#allocation5], 1
    %468 = vsyncpa [#allocation8], 1

</llo_original>
